<compile_context>
chip_gen: v6e
topology: v6e:2x2x1
jax: 0.10.0
libtpu: 0.0.40
codegen_flags: <defaults>
</compile_context>

<pallas_src>
import jax
import jax.numpy as jnp
from jax import lax
from jax.experimental import pallas as pl
from jax.experimental.pallas import tpu as pltpu

_LANE = 128           # TPU lane width: keep the output last dim a multiple of this.
_MAX_BATCH_TILE = 512  # batch rows per grid step for large B (multiple of 8 sublanes).


def embed_kernel(idx_ref, wbd_ref, out_ref):
    # idx_ref: (Bblk, F)       int32  -- raw feature indices (original layout)
    # wbd_ref: (F*Vmax, FEp)   f32    -- block-diagonal stacked tables (VMEM resident)
    # out_ref: (Bblk, FEp)     f32    -- all F embeddings per row, lane dense
    bblk, nf = idx_ref.shape
    fv = wbd_ref.shape[0]
    vmax = fv // nf

    idx = idx_ref[...]                                               # (Bblk, F)

    # One-hot selector over the concatenated vocab axis, built with ONE
    # vectorized compare. Per-feature slabs are disjoint, so the sum over the
    # feature axis is exactly 0/1 (no serial per-feature add chain).
    col = lax.broadcasted_iota(jnp.int32, (bblk, nf, fv), 2)         # global column
    feat = lax.broadcasted_iota(jnp.int32, (bblk, nf, fv), 1)        # feature id
    onehot = (col - feat * vmax == idx[:, :, None]).astype(jnp.float32)
    sel = onehot.sum(axis=1)                                         # (Bblk, F*Vmax)

    # One MXU matmul performs all F gathers; HIGHEST precision keeps the
    # one-hot gather bit-exact in f32 (no bf16 multi-pass rounding).
    out_ref[...] = jnp.dot(sel, wbd_ref[...],
                           preferred_element_type=jnp.float32,
                           precision=lax.Precision.HIGHEST)


def pack_block_diagonal(tables):
    """(F, Vmax, E) zero-padded per-feature tables -> (F*Vmax, FEp) block-diagonal.

    FEp = F*E rounded up to a multiple of 128 lanes so the kernel's output store
    stays lane-dense for any (F, E). One-time parameter preparation (not per
    forward call).
    """
    F, Vmax, E = tables.shape
    fe = F * E
    fep = max(_LANE, ((fe + _LANE - 1) // _LANE) * _LANE)
    wbd = jnp.zeros((F * Vmax, fep), dtype=tables.dtype)
    for f in range(F):
        wbd = wbd.at[f * Vmax:(f + 1) * Vmax, f * E:(f + 1) * E].set(tables[f])
    return wbd


def embedding_layer_forward(x, wbd, num_features, embedding_size):
    """x: (B, F) int indices; wbd: (F*Vmax, FEp) packed tables -> (B, F, E)."""
    B, F = x.shape
    assert F == num_features
    FV, FEp = wbd.shape
    fe = num_features * embedding_size
    assert FEp >= fe and FEp % _LANE == 0

    # Batch tiling: one grid step whenever the whole batch fits the tile budget
    # (amortizes per-step overhead, fills the MXU M dim); otherwise fixed
    # 512-row tiles with a padded ragged tail (never one giant fallback block).
    bblk = B if B <= _MAX_BATCH_TILE else _MAX_BATCH_TILE
    grid_b = pl.cdiv(B, bblk)
    b_padded = grid_b * bblk

    xi = x.astype(jnp.int32)
    if b_padded != B:
        # Pad tail rows with index 0 (always valid); they are sliced off below.
        xi = jnp.pad(xi, ((0, b_padded - B), (0, 0)))

    # Only request a parallel split when there are multiple steps to share
    # (v7x: 2 TCs); a single step just runs on one core with no split overhead.
    dim_sem = ("arbitrary",) if grid_b == 1 else ("parallel",)

    out = pl.pallas_call(
        embed_kernel,
        out_shape=jax.ShapeDtypeStruct((b_padded, FEp), wbd.dtype),
        grid=(grid_b,),
        in_specs=[
            # Indices in their original (B, F) layout, tiled over the batch.
            pl.BlockSpec((bblk, F), lambda i: (i, 0)),
            # Grid-invariant packed table: whole array resident in VMEM once,
            # no pipelining and therefore no wasteful double buffer.
            pl.BlockSpec(memory_space=pltpu.MemorySpace.VMEM),
        ],
        out_specs=pl.BlockSpec((bblk, FEp), lambda i: (i, 0)),
        compiler_params=pltpu.CompilerParams(dimension_semantics=dim_sem),
    )(xi, wbd)

    # Drop batch padding / lane padding, then a free reshape to (B, F, E):
    # (B, F*E) row-major is bit-identical to contiguous (B, F, E).
    out = out[:B, :fe]
    return out.reshape(B, num_features, embedding_size)


if __name__ == "__main__":
    # Module config (deterministic, synthetic parameters).
    max_input_features = [7, 11, 5, 9]        # per-feature max values
    embedding_size = 32
    B = 16
    F = len(max_input_features)
    Vmax = max(max_input_features) + 1

    key = jax.random.PRNGKey(0)
    keys = jax.random.split(key, F + 1)

    # nn.Embedding default init is N(0, 1); build padded stacked tables (F, Vmax, E).
    table_list = []
    for i, m in enumerate(max_input_features):
        t = jax.random.normal(keys[i], (m + 1, embedding_size), dtype=jnp.float32)
        t = jnp.pad(t, ((0, Vmax - (m + 1)), (0, 0)))
        table_list.append(t)
    tables = jnp.stack(table_list, axis=0)                       # (F, Vmax, E)

    # One-time parameter packing (block-diagonal fused table, lane-padded).
    wbd = pack_block_diagonal(tables)                            # (F*Vmax, FEp)

    # Valid indices: 0 <= x[:, i] <= max_input_features[i].
    maxes = jnp.asarray(max_input_features, dtype=jnp.int32)
    raw = jax.random.randint(keys[F], (B, F), 0, 1_000_000, dtype=jnp.int32)
    x = raw % (maxes + 1)

    out = embedding_layer_forward(x, wbd, F, embedding_size)
    out = jax.block_until_ready(out)

    # Pure-JAX reference of the PyTorch forward.
    ref = jnp.stack([tables[i][x[:, i]] for i in range(F)], axis=1)  # (B, F, E)

    assert out.shape == (B, F, embedding_size), out.shape
    assert out.dtype == jnp.float32
    assert jnp.allclose(out, ref, atol=1e-5), "mismatch vs reference gather"

    print("KERNEL_OK")
</pallas_src>

<mosaic_0001>
module attributes {stable_mosaic.version = 11 : i64} {
  func.func @embed_kernel(%arg0: i32, %arg1: memref<16x4xi32, #tpu.memory_space<vmem>>, %arg2: memref<48x128xf32, #tpu.memory_space<vmem>>, %arg3: memref<16x128xf32, #tpu.memory_space<vmem>>) attributes {dimension_semantics = [#tpu.dimension_semantics<arbitrary>], iteration_bounds = array<i64: 1>, scalar_prefetch = 0 : i64, scratch_operands = 0 : i64, tpu.core_type = #tpu.core_type<tc>, window_params = [{transform_indices = @transform_0, window_bounds = array<i64: 16, 4>}, {pipeline_mode = #tpu.pipeline_mode<synchronous>, transform_indices = @transform_1, window_bounds = array<i64: 48, 128>}, {transform_indices = @transform_2, window_bounds = array<i64: 16, 128>}]} {
    %c0 = arith.constant 0 : index
    %c0_0 = arith.constant 0 : index
    %0 = vector.load %arg1[%c0, %c0_0] : memref<16x4xi32, #tpu.memory_space<vmem>>, vector<16x4xi32>
    %1 = tpu.iota {dimensions = array<i32: 2>} : vector<16x4x48xi32>
    %2 = tpu.iota {dimensions = array<i32: 1>} : vector<16x4x48xi32>
    %c12_i32 = arith.constant 12 : i32
    %3 = vector.broadcast %c12_i32 : i32 to vector<16x4x48xi32>
    %4 = arith.muli %2, %3 : vector<16x4x48xi32>
    %5 = arith.subi %1, %4 : vector<16x4x48xi32>
    %6 = vector.shape_cast %0 : vector<16x4xi32> to vector<16x4x1xi32>
    %7 = vector.broadcast %6 : vector<16x4x1xi32> to vector<16x4x48xi32>
    %8 = arith.cmpi eq, %5, %7 : vector<16x4x48xi32>
    %9 = arith.extui %8 : vector<16x4x48xi1> to vector<16x4x48xi32>
    %10 = arith.sitofp %9 : vector<16x4x48xi32> to vector<16x4x48xf32>
    %cst = arith.constant dense<0.000000e+00> : vector<16x48xf32>
    %11 = vector.multi_reduction <add>, %10, %cst [1] : vector<16x4x48xf32> to vector<16x48xf32>
    %c0_1 = arith.constant 0 : index
    %c0_2 = arith.constant 0 : index
    %12 = vector.load %arg2[%c0_1, %c0_2] : memref<48x128xf32, #tpu.memory_space<vmem>>, vector<48x128xf32>
    %cst_3 = arith.constant dense<0.000000e+00> : vector<16x128xf32>
    %13 = tpu.matmul %11, %12, %cst_3 {dimension_numbers = #tpu.dot_dimension_numbers<[1], [0], [0], [1], [0, 0, 1, 1], [], []>, precision = #tpu.contract_precision<fp32>} : vector<16x48xf32>, vector<48x128xf32>, vector<16x128xf32> -> vector<16x128xf32>
    %c0_4 = arith.constant 0 : index
    %c0_5 = arith.constant 0 : index
    %14 = vector.load %arg3[%c0_4, %c0_5] : memref<16x128xf32, #tpu.memory_space<vmem>>, vector<16x128xf32>
    tpu.vector_store %arg3[%c0_4, %c0_5], %13 {strides = array<i32>} : memref<16x128xf32, #tpu.memory_space<vmem>>, vector<16x128xf32>,
    return
  }
  func.func @transform_0(%arg0: i32) -> (i32, i32) {
    %c0_i32 = arith.constant 0 : i32
    %c0_i32_0 = arith.constant 0 : i32
    return %arg0, %c0_i32 : i32, i32
  }
  func.func @transform_1(%arg0: i32) -> (i32, i32) {
    %c0_i32 = arith.constant 0 : i32
    %c0_i32_0 = arith.constant 0 : i32
    %c0_i32_1 = arith.constant 0 : i32
    return %c0_i32, %c0_i32_0 : i32, i32
  }
  func.func @transform_2(%arg0: i32) -> (i32, i32) {
    %c0_i32 = arith.constant 0 : i32
    %c0_i32_0 = arith.constant 0 : i32
    return %arg0, %c0_i32 : i32, i32
  }
}

</mosaic_0001>

<llo_original>
// kernel: tpu_custom_call.1
$region0: #{tpu_custom_call.1}
  #allocation0 [shape = 'u32[]', space=smem, size = 0x4, offset = 0x4, fixed_abs, tag = 'smem constant byte address 0x4 - core index']
  #allocation1 [shape = 'u32[144,128]{1,0:T(1,128)}', space=vmem, size = 0x12000, scoped, tag = 'internal scratch']
  %s0 = inlined_call_operand.vmem [shape: s32[16,4], index: 0, kind: input, shape index: {}]
  %s1 = inlined_call_operand.hbm [shape: f32[48,128], index: 1, kind: input, shape index: {}]
  %s2 = inlined_call_operand.hbm [shape: f32[16,128], index: 2, kind: output, shape index: {}]
  %s3 = sld [smem:[#allocation0]]
  $region22: #{tpu_custom_call.1} parent=0
    _
  %s5 = ssub.s32 1, %s3
  %s6 = scalar_select 0, %s5, %s3
  $region1: #{tpu_custom_call.1} parent=0
    #allocation2 [shape = 'u8[24576]{0}', space=vmem, size = 0x6000, scoped, tag = 'input window, operand 1, single buffered']
    #allocation3 [shape = 's32[1]{0}', space=sflag, size = 0x4, scoped, tag = 'scoped memory for tpu_custom_call.1']
    #allocation4 [shape = 's32[1]{0}', space=sflag, size = 0x4, scoped, tag = 'scoped memory for tpu_custom_call.1']
    #allocation5 [shape = 'u8[8192]{0}', space=vmem, size = 0x2000, scoped, tag = 'output window, operand 0, single buffered']
    %7 = vsyncpa [#allocation3], 0
    %8 = vsyncpa [#allocation4], 0
    // Predicated region
    $region2: #{tpu_custom_call.1} parent=1 // pred_check
      _
    $region3: #{tpu_custom_call.1} parent=1 // pred_check_branch
      %10 = sbr.rel (0) target = $region5
    $region4: #{tpu_custom_call.1} parent=1 // pred_region
      _
    $region5: #{tpu_custom_call.1} parent=1 // pred_fallthru
      _
    // Predicated region
    $region6: #{tpu_custom_call.1} parent=1 // pred_check
      _
    $region7: #{tpu_custom_call.1} parent=1 // pred_check_branch
      %12 = sbr.rel (0) target = $region9
    $region8: #{tpu_custom_call.1} parent=1 // pred_region
      %s14 = ssub.s32 768, 768
      %15 = vsyncadd [#allocation3], %s14
      %s16 = sshll.u32 [#allocation2], 4
      %s17 = int_to_ptr.vmem [resolvable:$true] %s16
      %22 = dma.hbm_to_vmem [thread:$0]  %s1, 768, %s17, [#allocation3], 128, 128, 8
    $region9: #{tpu_custom_call.1} parent=1 // pred_fallthru
      _
    // Predicated region
    $region10: #{tpu_custom_call.1} parent=1 // pred_check
      _
    $region11: #{tpu_custom_call.1} parent=1 // pred_check_branch
      %24 = sbr.rel (0) target = $region13
    $region12: #{tpu_custom_call.1} parent=1 // pred_region
      %25 = dma.done [#allocation3], 768
    $region13: #{tpu_custom_call.1} parent=1 // pred_fallthru
      _
    %v26 = vld [vmem:[%s0] sm:$0xff]
    %v27 = vld [vmem:[%s0 + $0x8] sm:$0xff]
    %v28 = vlaneseq
    %v29 = vand.u32 %v28, 127
    %v30 = vlaneseq
    %v31 = vshrl.u32 %v30, 7
    %v32 = vmul.u32 %v31, 12
    %v33 = vsub.s32 %v29, %v32
    %v34 = vlaneseq
    %v35 = vshrl.u32 %v34, 7
    %v36 = vsub.s32 0, %v35
    %v37 = vrot.slane %v26, %v36
    %39 = vbcast.lane.b32.xlu0 %v37, 256
    %v40 = vpop.permute.xlu0 %39
    %v41 = vlaneseq
    %v42 = vshrl.u32 %v41, 7
    %v43 = vsub.s32 1, %v42
    %v44 = vrot.slane %v26, %v43
    %46 = vbcast.lane.b32.xlu0 %v44, 256
    %v47 = vpop.permute.xlu0 %46
    %v48 = vlaneseq
    %v49 = vshrl.u32 %v48, 7
    %v50 = vsub.s32 2, %v49
    %v51 = vrot.slane %v26, %v50
    %53 = vbcast.lane.b32.xlu0 %v51, 256
    %v54 = vpop.permute.xlu0 %53
    %v55 = vlaneseq
    %v56 = vshrl.u32 %v55, 7
    %v57 = vsub.s32 3, %v56
    %v58 = vrot.slane %v26, %v57
    %60 = vbcast.lane.b32.xlu0 %v58, 256
    %v61 = vpop.permute.xlu0 %60
    %v62 = vlaneseq
    %v63 = vshrl.u32 %v62, 7
    %v64 = vsub.s32 4, %v63
    %v65 = vrot.slane %v26, %v64
    %67 = vbcast.lane.b32.xlu0 %v65, 256
    %v68 = vpop.permute.xlu0 %67
    %v69 = vlaneseq
    %v70 = vshrl.u32 %v69, 7
    %v71 = vsub.s32 5, %v70
    %v72 = vrot.slane %v26, %v71
    %74 = vbcast.lane.b32.xlu0 %v72, 256
    %v75 = vpop.permute.xlu0 %74
    %v76 = vlaneseq
    %v77 = vshrl.u32 %v76, 7
    %v78 = vsub.s32 6, %v77
    %v79 = vrot.slane %v26, %v78
    %81 = vbcast.lane.b32.xlu0 %v79, 256
    %v82 = vpop.permute.xlu0 %81
    %v83 = vlaneseq
    %v84 = vshrl.u32 %v83, 7
    %v85 = vsub.s32 7, %v84
    %v86 = vrot.slane %v26, %v85
    %88 = vbcast.lane.b32.xlu0 %v86, 256
    %v89 = vpop.permute.xlu0 %88
    %v90 = vlaneseq
    %v91 = vshrl.u32 %v90, 7
    %v92 = vsub.s32 0, %v91
    %v93 = vrot.slane %v27, %v92
    %95 = vbcast.lane.b32.xlu0 %v93, 256
    %v96 = vpop.permute.xlu0 %95
    %v97 = vlaneseq
    %v98 = vshrl.u32 %v97, 7
    %v99 = vsub.s32 1, %v98
    %v100 = vrot.slane %v27, %v99
    %102 = vbcast.lane.b32.xlu0 %v100, 256
    %v103 = vpop.permute.xlu0 %102
    %v104 = vlaneseq
    %v105 = vshrl.u32 %v104, 7
    %v106 = vsub.s32 2, %v105
    %v107 = vrot.slane %v27, %v106
    %109 = vbcast.lane.b32.xlu0 %v107, 256
    %v110 = vpop.permute.xlu0 %109
    %v111 = vlaneseq
    %v112 = vshrl.u32 %v111, 7
    %v113 = vsub.s32 3, %v112
    %v114 = vrot.slane %v27, %v113
    %116 = vbcast.lane.b32.xlu0 %v114, 256
    %v117 = vpop.permute.xlu0 %116
    %v118 = vlaneseq
    %v119 = vshrl.u32 %v118, 7
    %v120 = vsub.s32 4, %v119
    %v121 = vrot.slane %v27, %v120
    %123 = vbcast.lane.b32.xlu0 %v121, 256
    %v124 = vpop.permute.xlu0 %123
    %v125 = vlaneseq
    %v126 = vshrl.u32 %v125, 7
    %v127 = vsub.s32 5, %v126
    %v128 = vrot.slane %v27, %v127
    %130 = vbcast.lane.b32.xlu0 %v128, 256
    %v131 = vpop.permute.xlu0 %130
    %v132 = vlaneseq
    %v133 = vshrl.u32 %v132, 7
    %v134 = vsub.s32 6, %v133
    %v135 = vrot.slane %v27, %v134
    %137 = vbcast.lane.b32.xlu0 %v135, 256
    %v138 = vpop.permute.xlu0 %137
    %v139 = vlaneseq
    %v140 = vshrl.u32 %v139, 7
    %v141 = vsub.s32 7, %v140
    %v142 = vrot.slane %v27, %v141
    %144 = vbcast.lane.b32.xlu0 %v142, 256
    %v145 = vpop.permute.xlu0 %144
    %vm146 = vcmp.eq.s32.totalorder %v33, %v40
    %vm147 = vcmp.eq.s32.totalorder %v33, %v47
    %vm148 = vcmp.eq.s32.totalorder %v33, %v54
    %vm149 = vcmp.eq.s32.totalorder %v33, %v61
    %vm150 = vcmp.eq.s32.totalorder %v33, %v68
    %vm151 = vcmp.eq.s32.totalorder %v33, %v75
    %vm152 = vcmp.eq.s32.totalorder %v33, %v82
    %vm153 = vcmp.eq.s32.totalorder %v33, %v89
    %vm154 = vcmp.eq.s32.totalorder %v33, %v96
    %vm155 = vcmp.eq.s32.totalorder %v33, %v103
    %vm156 = vcmp.eq.s32.totalorder %v33, %v110
    %vm157 = vcmp.eq.s32.totalorder %v33, %v117
    %vm158 = vcmp.eq.s32.totalorder %v33, %v124
    %vm159 = vcmp.eq.s32.totalorder %v33, %v131
    %vm160 = vcmp.eq.s32.totalorder %v33, %v138
    %vm161 = vcmp.eq.s32.totalorder %v33, %v145
    %v162 = vsel %vm146, 1, 0
    %v163 = vsel %vm147, 1, 0
    %v164 = vsel %vm148, 1, 0
    %v165 = vsel %vm149, 1, 0
    %v166 = vsel %vm150, 1, 0
    %v167 = vsel %vm151, 1, 0
    %v168 = vsel %vm152, 1, 0
    %v169 = vsel %vm153, 1, 0
    %v170 = vsel %vm154, 1, 0
    %v171 = vsel %vm155, 1, 0
    %v172 = vsel %vm156, 1, 0
    %v173 = vsel %vm157, 1, 0
    %v174 = vsel %vm158, 1, 0
    %v175 = vsel %vm159, 1, 0
    %v176 = vsel %vm160, 1, 0
    %v177 = vsel %vm161, 1, 0
    %v178 = vcvt.s32.f32 %v162
    %v179 = vcvt.s32.f32 %v163
    %v180 = vcvt.s32.f32 %v164
    %v181 = vcvt.s32.f32 %v165
    %v182 = vcvt.s32.f32 %v166
    %v183 = vcvt.s32.f32 %v167
    %v184 = vcvt.s32.f32 %v168
    %v185 = vcvt.s32.f32 %v169
    %v186 = vcvt.s32.f32 %v170
    %v187 = vcvt.s32.f32 %v171
    %v188 = vcvt.s32.f32 %v172
    %v189 = vcvt.s32.f32 %v173
    %v190 = vcvt.s32.f32 %v174
    %v191 = vcvt.s32.f32 %v175
    %v192 = vcvt.s32.f32 %v176
    %v193 = vcvt.s32.f32 %v177
    %vm194 = vcmask 388096
    %v195 = vsel %vm194, %v178, 0.0
    %v196 = vrot.slane %v195, 4
    %v197 = vadd.f32 %v195, %v196
    %v198 = vrot.slane %v197, 2
    %v199 = vadd.f32 %v197, %v198
    %v200 = vrot.slane %v199, 1
    %v201 = vadd.f32 %v199, %v200
    %v202 = vsel %vm194, %v179, 0.0
    %v203 = vrot.slane %v202, 4
    %v204 = vadd.f32 %v202, %v203
    %v205 = vrot.slane %v204, 2
    %v206 = vadd.f32 %v204, %v205
    %v207 = vrot.slane %v206, 1
    %v208 = vadd.f32 %v206, %v207
    %v209 = vsel %vm194, %v180, 0.0
    %v210 = vrot.slane %v209, 4
    %v211 = vadd.f32 %v209, %v210
    %v212 = vrot.slane %v211, 2
    %v213 = vadd.f32 %v211, %v212
    %v214 = vrot.slane %v213, 1
    %v215 = vadd.f32 %v213, %v214
    %v216 = vsel %vm194, %v181, 0.0
    %v217 = vrot.slane %v216, 4
    %v218 = vadd.f32 %v216, %v217
    %v219 = vrot.slane %v218, 2
    %v220 = vadd.f32 %v218, %v219
    %v221 = vrot.slane %v220, 1
    %v222 = vadd.f32 %v220, %v221
    %v223 = vsel %vm194, %v182, 0.0
    %v224 = vrot.slane %v223, 4
    %v225 = vadd.f32 %v223, %v224
    %v226 = vrot.slane %v225, 2
    %v227 = vadd.f32 %v225, %v226
    %v228 = vrot.slane %v227, 1
    %v229 = vadd.f32 %v227, %v228
    %v230 = vsel %vm194, %v183, 0.0
    %v231 = vrot.slane %v230, 4
    %v232 = vadd.f32 %v230, %v231
    %v233 = vrot.slane %v232, 2
    %v234 = vadd.f32 %v232, %v233
    %v235 = vrot.slane %v234, 1
    %v236 = vadd.f32 %v234, %v235
    %v237 = vsel %vm194, %v184, 0.0
    %v238 = vrot.slane %v237, 4
    %v239 = vadd.f32 %v237, %v238
    %v240 = vrot.slane %v239, 2
    %v241 = vadd.f32 %v239, %v240
    %v242 = vrot.slane %v241, 1
    %v243 = vadd.f32 %v241, %v242
    %v244 = vsel %vm194, %v185, 0.0
    %v245 = vrot.slane %v244, 4
    %v246 = vadd.f32 %v244, %v245
    %v247 = vrot.slane %v246, 2
    %v248 = vadd.f32 %v246, %v247
    %v249 = vrot.slane %v248, 1
    %v250 = vadd.f32 %v248, %v249
    %v251 = vsel %vm194, %v186, 0.0
    %v252 = vrot.slane %v251, 4
    %v253 = vadd.f32 %v251, %v252
    %v254 = vrot.slane %v253, 2
    %v255 = vadd.f32 %v253, %v254
    %v256 = vrot.slane %v255, 1
    %v257 = vadd.f32 %v255, %v256
    %v258 = vsel %vm194, %v187, 0.0
    %v259 = vrot.slane %v258, 4
    %v260 = vadd.f32 %v258, %v259
    %v261 = vrot.slane %v260, 2
    %v262 = vadd.f32 %v260, %v261
    %v263 = vrot.slane %v262, 1
    %v264 = vadd.f32 %v262, %v263
    %v265 = vsel %vm194, %v188, 0.0
    %v266 = vrot.slane %v265, 4
    %v267 = vadd.f32 %v265, %v266
    %v268 = vrot.slane %v267, 2
    %v269 = vadd.f32 %v267, %v268
    %v270 = vrot.slane %v269, 1
    %v271 = vadd.f32 %v269, %v270
    %v272 = vsel %vm194, %v189, 0.0
    %v273 = vrot.slane %v272, 4
    %v274 = vadd.f32 %v272, %v273
    %v275 = vrot.slane %v274, 2
    %v276 = vadd.f32 %v274, %v275
    %v277 = vrot.slane %v276, 1
    %v278 = vadd.f32 %v276, %v277
    %v279 = vsel %vm194, %v190, 0.0
    %v280 = vrot.slane %v279, 4
    %v281 = vadd.f32 %v279, %v280
    %v282 = vrot.slane %v281, 2
    %v283 = vadd.f32 %v281, %v282
    %v284 = vrot.slane %v283, 1
    %v285 = vadd.f32 %v283, %v284
    %v286 = vsel %vm194, %v191, 0.0
    %v287 = vrot.slane %v286, 4
    %v288 = vadd.f32 %v286, %v287
    %v289 = vrot.slane %v288, 2
    %v290 = vadd.f32 %v288, %v289
    %v291 = vrot.slane %v290, 1
    %v292 = vadd.f32 %v290, %v291
    %v293 = vsel %vm194, %v192, 0.0
    %v294 = vrot.slane %v293, 4
    %v295 = vadd.f32 %v293, %v294
    %v296 = vrot.slane %v295, 2
    %v297 = vadd.f32 %v295, %v296
    %v298 = vrot.slane %v297, 1
    %v299 = vadd.f32 %v297, %v298
    %v300 = vsel %vm194, %v193, 0.0
    %v301 = vrot.slane %v300, 4
    %v302 = vadd.f32 %v300, %v301
    %v303 = vrot.slane %v302, 2
    %v304 = vadd.f32 %v302, %v303
    %v305 = vrot.slane %v304, 1
    %v306 = vadd.f32 %v304, %v305
    %v307 = vld [vmem:[#allocation2] sm:$0xff]
    %v308 = vld [vmem:[#allocation2 + $0x8] sm:$0xff]
    %v309 = vld [vmem:[#allocation2 + $0x10] sm:$0xff]
    %v310 = vld [vmem:[#allocation2 + $0x18] sm:$0xff]
    %v311 = vld [vmem:[#allocation2 + $0x20] sm:$0xff]
    %v312 = vld [vmem:[#allocation2 + $0x28] sm:$0xff]
    %vm329 = vcmask 1041409
    %v330 = vsel %vm329, %v208, %v201
    %vm331 = vcmask 1042434
    %v332 = vsel %vm331, %v215, %v330
    %vm333 = vcmask 1043459
    %v334 = vsel %vm333, %v222, %v332
    %vm335 = vcmask 1044484
    %v336 = vsel %vm335, %v229, %v334
    %vm337 = vcmask 1045509
    %v338 = vsel %vm337, %v236, %v336
    %vm339 = vcmask 1046534
    %v340 = vsel %vm339, %v243, %v338
    %vm341 = vcmask 1047559
    %v342 = vsel %vm341, %v250, %v340
    %v343 = vsel %vm329, %v264, %v257
    %v344 = vsel %vm331, %v271, %v343
    %v345 = vsel %vm333, %v278, %v344
    %v346 = vsel %vm335, %v285, %v345
    %v347 = vsel %vm337, %v292, %v346
    %v348 = vsel %vm339, %v299, %v347
    %v349 = vsel %vm341, %v306, %v348
    %vm350 = vcmask 392192
    %v351 = vsel %vm350, %v342, 0
    %v353 = vsel %vm350, %v349, 0
    %355 = vmatprep.subr.mxu0 0.0
    %356 = vmatpush1.msra.mxu0 0.0
    %357 = vmatprep.subr.mxu0 0.0
    %358 = vmatpush1.msra.mxu0 0.0
    %359 = vmatprep.subr.mxu0 0.0
    %360 = vmatpush1.msra.mxu0 0.0
    %361 = vmatprep.subr.mxu0 0.0
    %362 = vmatpush1.msra.mxu0 0.0
    %363 = vmatprep.subr.mxu0 0.0
    %364 = vmatpush1.msra.mxu0 0.0
    %365 = vmatprep.subr.mxu0 0.0
    %366 = vmatpush1.msra.mxu0 0.0
    %367 = vmatprep.subr.mxu0 0.0
    %368 = vmatpush1.msra.mxu0 0.0
    %369 = vmatprep.subr.mxu0 0.0
    %370 = vmatpush1.msra.mxu0 0.0
    %371 = vmatprep.subr.mxu0 0.0
    %372 = vmatpush1.msra.mxu0 0.0
    %373 = vmatprep.subr.mxu0 0.0
    %374 = vmatpush1.msra.mxu0 0.0
    %375 = vmatprep.subr.mxu0 0.0
    %v376 = vand.u32 %v312, 4294901760
    %377 = vmatpush1.msra.mxu0 %v376
    %378 = vmatprep.subr.mxu0 0.0
    %v379 = vand.u32 %v311, 4294901760
    %380 = vmatpush1.msra.mxu0 %v379
    %381 = vmatprep.subr.mxu0 0.0
    %v382 = vand.u32 %v310, 4294901760
    %383 = vmatpush1.msra.mxu0 %v382
    %384 = vmatprep.subr.mxu0 0.0
    %v385 = vand.u32 %v309, 4294901760
    %386 = vmatpush1.msra.mxu0 %v385
    %387 = vmatprep.subr.mxu0 0.0
    %v388 = vand.u32 %v308, 4294901760
    %389 = vmatpush1.msra.mxu0 %v388
    %390 = vmatprep.subr.mxu0 0.0
    %v391 = vand.u32 %v307, 4294901760
    %392 = vmatpush1.msra.mxu0 %v391
    %393 = vmatprep.subr.mxu0 0.0
    %394 = vmatpush2.msra.mxu0 0.0
    %395 = vmatprep.subr.mxu0 0.0
    %396 = vmatpush2.msra.mxu0 0.0
    %397 = vmatprep.subr.mxu0 0.0
    %398 = vmatpush2.msra.mxu0 0.0
    %399 = vmatprep.subr.mxu0 0.0
    %400 = vmatpush2.msra.mxu0 0.0
    %401 = vmatprep.subr.mxu0 0.0
    %402 = vmatpush2.msra.mxu0 0.0
    %403 = vmatprep.subr.mxu0 0.0
    %404 = vmatpush2.msra.mxu0 0.0
    %405 = vmatprep.subr.mxu0 0.0
    %406 = vmatpush2.msra.mxu0 0.0
    %407 = vmatprep.subr.mxu0 0.0
    %408 = vmatpush2.msra.mxu0 0.0
    %409 = vmatprep.subr.mxu0 0.0
    %410 = vmatpush2.msra.mxu0 0.0
    %411 = vmatprep.subr.mxu0 0.0
    %412 = vmatpush2.msra.mxu0 0.0
    %413 = vmatprep.subr.mxu0 0.0
    %414 = vmatpush2.msra.mxu0 0.0
    %415 = vmatprep.subr.mxu0 0.0
    %416 = vmatpush2.msra.mxu0 0.0
    %417 = vmatprep.subr.mxu0 0.0
    %418 = vmatpush2.msra.mxu0 0.0
    %419 = vmatprep.subr.mxu0 0.0
    %420 = vmatpush2.msra.mxu0 0.0
    %421 = vmatprep.subr.mxu0 0.0
    %422 = vmatpush2.msra.mxu0 0.0
    %423 = vmatprep.subr.mxu0 0.0
    %424 = vmatpush2.msra.mxu0 0.0
    %425 = vmatprep.mubr.f32.mxu0 0.0
    %v426 = vand.u32 %v351, 4294901760
    %v427 = vsub.f32 %v351, %v426
    %v428 = vand.u32 %v427, 4294901760
    %v429 = vsub.f32 %v427, %v428
    %v430 = vand.u32 %v429, 4294901760
    %431 = vmatmul.mubr.f32.gmra.mxu0 %v430
    %v432 = vpop.f32.mrf.mxu0
    %v433 = vadd.f32 0.0, %v432
    %v434 = vpop.f32.mrf.mxu0
    %435 = vmatprep.mubr.f32.mxu0 0.0
    %v436 = vand.u32 %v353, 4294901760
    %v437 = vsub.f32 %v353, %v436
    %v438 = vand.u32 %v437, 4294901760
    %v439 = vsub.f32 %v437, %v438
    %v440 = vand.u32 %v439, 4294901760
    %441 = vmatmul.mubr.f32.gmra.mxu0 %v440
    %v442 = vpop.f32.mrf.mxu0
    %v443 = vadd.f32 0.0, %v442
    %v444 = vpop.f32.mrf.mxu0
    %445 = vdwg.mxu0
    %446 = vmatprep.subr.mxu0 0.0
    %447 = vmatpush1.msra.mxu0 0.0
    %448 = vmatprep.subr.mxu0 0.0
    %449 = vmatpush1.msra.mxu0 0.0
    %450 = vmatprep.subr.mxu0 0.0
    %451 = vmatpush1.msra.mxu0 0.0
    %452 = vmatprep.subr.mxu0 0.0
    %453 = vmatpush1.msra.mxu0 0.0
    %454 = vmatprep.subr.mxu0 0.0
    %455 = vmatpush1.msra.mxu0 0.0
    %456 = vmatprep.subr.mxu0 0.0
    %457 = vmatpush1.msra.mxu0 0.0
    %458 = vmatprep.subr.mxu0 0.0
    %459 = vmatpush1.msra.mxu0 0.0
    %460 = vmatprep.subr.mxu0 0.0
    %461 = vmatpush1.msra.mxu0 0.0
    %462 = vmatprep.subr.mxu0 0.0
    %463 = vmatpush1.msra.mxu0 0.0
    %464 = vmatprep.subr.mxu0 0.0
    %465 = vmatpush1.msra.mxu0 0.0
    %466 = vmatprep.subr.mxu0 0.0
    %v467 = vand.u32 %v312, 4294901760
    %v468 = vsub.f32 %v312, %v467
    %v469 = vand.u32 %v468, 4294901760
    %v470 = vsub.f32 %v468, %v469
    %v471 = vand.u32 %v470, 4294901760
    %472 = vmatpush1.msra.mxu0 %v471
    %473 = vmatprep.subr.mxu0 0.0
    %v474 = vand.u32 %v311, 4294901760
    %v475 = vsub.f32 %v311, %v474
    %v476 = vand.u32 %v475, 4294901760
    %v477 = vsub.f32 %v475, %v476
    %v478 = vand.u32 %v477, 4294901760
    %479 = vmatpush1.msra.mxu0 %v478
    %480 = vmatprep.subr.mxu0 0.0
    %v481 = vand.u32 %v310, 4294901760
    %v482 = vsub.f32 %v310, %v481
    %v483 = vand.u32 %v482, 4294901760
    %v484 = vsub.f32 %v482, %v483
    %v485 = vand.u32 %v484, 4294901760
    %486 = vmatpush1.msra.mxu0 %v485
    %487 = vmatprep.subr.mxu0 0.0
    %v488 = vand.u32 %v309, 4294901760
    %v489 = vsub.f32 %v309, %v488
    %v490 = vand.u32 %v489, 4294901760
    %v491 = vsub.f32 %v489, %v490
    %v492 = vand.u32 %v491, 4294901760
    %493 = vmatpush1.msra.mxu0 %v492
    %494 = vmatprep.subr.mxu0 0.0
    %v495 = vand.u32 %v308, 4294901760
    %v496 = vsub.f32 %v308, %v495
    %v497 = vand.u32 %v496, 4294901760
    %v498 = vsub.f32 %v496, %v497
    %v499 = vand.u32 %v498, 4294901760
    %500 = vmatpush1.msra.mxu0 %v499
    %501 = vmatprep.subr.mxu0 0.0
    %v502 = vand.u32 %v307, 4294901760
    %v503 = vsub.f32 %v307, %v502
    %v504 = vand.u32 %v503, 4294901760
    %v505 = vsub.f32 %v503, %v504
    %v506 = vand.u32 %v505, 4294901760
    %507 = vmatpush1.msra.mxu0 %v506
    %508 = vmatprep.subr.mxu0 0.0
    %509 = vmatpush2.msra.mxu0 0.0
    %510 = vmatprep.subr.mxu0 0.0
    %511 = vmatpush2.msra.mxu0 0.0
    %512 = vmatprep.subr.mxu0 0.0
    %513 = vmatpush2.msra.mxu0 0.0
    %514 = vmatprep.subr.mxu0 0.0
    %515 = vmatpush2.msra.mxu0 0.0
    %516 = vmatprep.subr.mxu0 0.0
    %517 = vmatpush2.msra.mxu0 0.0
    %518 = vmatprep.subr.mxu0 0.0
    %519 = vmatpush2.msra.mxu0 0.0
    %520 = vmatprep.subr.mxu0 0.0
    %521 = vmatpush2.msra.mxu0 0.0
    %522 = vmatprep.subr.mxu0 0.0
    %523 = vmatpush2.msra.mxu0 0.0
    %524 = vmatprep.subr.mxu0 0.0
    %525 = vmatpush2.msra.mxu0 0.0
    %526 = vmatprep.subr.mxu0 0.0
    %527 = vmatpush2.msra.mxu0 0.0
    %528 = vmatprep.subr.mxu0 0.0
    %529 = vmatpush2.msra.mxu0 0.0
    %530 = vmatprep.subr.mxu0 0.0
    %531 = vmatpush2.msra.mxu0 0.0
    %532 = vmatprep.subr.mxu0 0.0
    %533 = vmatpush2.msra.mxu0 0.0
    %534 = vmatprep.subr.mxu0 0.0
    %535 = vmatpush2.msra.mxu0 0.0
    %536 = vmatprep.subr.mxu0 0.0
    %537 = vmatpush2.msra.mxu0 0.0
    %538 = vmatprep.subr.mxu0 0.0
    %539 = vmatpush2.msra.mxu0 0.0
    %540 = vmatprep.mubr.f32.mxu0 0.0
    %v541 = vand.u32 %v351, 4294901760
    %542 = vmatmul.mubr.f32.gmra.mxu0 %v541
    %v543 = vpop.f32.mrf.mxu0
    %v544 = vadd.f32 %v433, %v543
    %v545 = vpop.f32.mrf.mxu0
    %546 = vmatprep.mubr.f32.mxu0 0.0
    %v547 = vand.u32 %v353, 4294901760
    %548 = vmatmul.mubr.f32.gmra.mxu0 %v547
    %v549 = vpop.f32.mrf.mxu0
    %v550 = vadd.f32 %v443, %v549
    %v551 = vpop.f32.mrf.mxu0
    %552 = vdwg.mxu0
    %553 = vmatprep.subr.mxu0 0.0
    %554 = vmatpush1.msra.mxu0 0.0
    %555 = vmatprep.subr.mxu0 0.0
    %556 = vmatpush1.msra.mxu0 0.0
    %557 = vmatprep.subr.mxu0 0.0
    %558 = vmatpush1.msra.mxu0 0.0
    %559 = vmatprep.subr.mxu0 0.0
    %560 = vmatpush1.msra.mxu0 0.0
    %561 = vmatprep.subr.mxu0 0.0
    %562 = vmatpush1.msra.mxu0 0.0
    %563 = vmatprep.subr.mxu0 0.0
    %564 = vmatpush1.msra.mxu0 0.0
    %565 = vmatprep.subr.mxu0 0.0
    %566 = vmatpush1.msra.mxu0 0.0
    %567 = vmatprep.subr.mxu0 0.0
    %568 = vmatpush1.msra.mxu0 0.0
    %569 = vmatprep.subr.mxu0 0.0
    %570 = vmatpush1.msra.mxu0 0.0
    %571 = vmatprep.subr.mxu0 0.0
    %572 = vmatpush1.msra.mxu0 0.0
    %573 = vmatprep.subr.mxu0 0.0
    %v574 = vand.u32 %v312, 4294901760
    %v575 = vsub.f32 %v312, %v574
    %576 = vmatpush1.msra.mxu0 %v575
    %577 = vmatprep.subr.mxu0 0.0
    %v578 = vand.u32 %v311, 4294901760
    %v579 = vsub.f32 %v311, %v578
    %580 = vmatpush1.msra.mxu0 %v579
    %581 = vmatprep.subr.mxu0 0.0
    %v582 = vand.u32 %v310, 4294901760
    %v583 = vsub.f32 %v310, %v582
    %584 = vmatpush1.msra.mxu0 %v583
    %585 = vmatprep.subr.mxu0 0.0
    %v586 = vand.u32 %v309, 4294901760
    %v587 = vsub.f32 %v309, %v586
    %588 = vmatpush1.msra.mxu0 %v587
    %589 = vmatprep.subr.mxu0 0.0
    %v590 = vand.u32 %v308, 4294901760
    %v591 = vsub.f32 %v308, %v590
    %592 = vmatpush1.msra.mxu0 %v591
    %593 = vmatprep.subr.mxu0 0.0
    %v594 = vand.u32 %v307, 4294901760
    %v595 = vsub.f32 %v307, %v594
    %596 = vmatpush1.msra.mxu0 %v595
    %597 = vmatprep.subr.mxu0 0.0
    %598 = vmatpush2.msra.mxu0 0.0
    %599 = vmatprep.subr.mxu0 0.0
    %600 = vmatpush2.msra.mxu0 0.0
    %601 = vmatprep.subr.mxu0 0.0
    %602 = vmatpush2.msra.mxu0 0.0
    %603 = vmatprep.subr.mxu0 0.0
    %604 = vmatpush2.msra.mxu0 0.0
    %605 = vmatprep.subr.mxu0 0.0
    %606 = vmatpush2.msra.mxu0 0.0
    %607 = vmatprep.subr.mxu0 0.0
    %608 = vmatpush2.msra.mxu0 0.0
    %609 = vmatprep.subr.mxu0 0.0
    %610 = vmatpush2.msra.mxu0 0.0
    %611 = vmatprep.subr.mxu0 0.0
    %612 = vmatpush2.msra.mxu0 0.0
    %613 = vmatprep.subr.mxu0 0.0
    %614 = vmatpush2.msra.mxu0 0.0
    %615 = vmatprep.subr.mxu0 0.0
    %616 = vmatpush2.msra.mxu0 0.0
    %617 = vmatprep.subr.mxu0 0.0
    %618 = vmatpush2.msra.mxu0 0.0
    %619 = vmatprep.subr.mxu0 0.0
    %620 = vmatpush2.msra.mxu0 0.0
    %621 = vmatprep.subr.mxu0 0.0
    %622 = vmatpush2.msra.mxu0 0.0
    %623 = vmatprep.subr.mxu0 0.0
    %624 = vmatpush2.msra.mxu0 0.0
    %625 = vmatprep.subr.mxu0 0.0
    %626 = vmatpush2.msra.mxu0 0.0
    %627 = vmatprep.subr.mxu0 0.0
    %628 = vmatpush2.msra.mxu0 0.0
    %629 = vmatprep.mubr.f32.mxu0 0.0
    %v630 = vand.u32 %v351, 4294901760
    %v631 = vsub.f32 %v351, %v630
    %632 = vmatmul.mubr.f32.gmra.mxu0 %v631
    %v633 = vpop.f32.mrf.mxu0
    %v634 = vadd.f32 %v544, %v633
    %v635 = vpop.f32.mrf.mxu0
    %636 = vmatprep.mubr.f32.mxu0 0.0
    %v637 = vand.u32 %v353, 4294901760
    %v638 = vsub.f32 %v353, %v637
    %639 = vmatmul.mubr.f32.gmra.mxu0 %v638
    %v640 = vpop.f32.mrf.mxu0
    %v641 = vadd.f32 %v550, %v640
    %v642 = vpop.f32.mrf.mxu0
    %643 = vdwg.mxu0
    %644 = vmatprep.subr.mxu0 0.0
    %645 = vmatpush1.msra.mxu0 0.0
    %646 = vmatprep.subr.mxu0 0.0
    %647 = vmatpush1.msra.mxu0 0.0
    %648 = vmatprep.subr.mxu0 0.0
    %649 = vmatpush1.msra.mxu0 0.0
    %650 = vmatprep.subr.mxu0 0.0
    %651 = vmatpush1.msra.mxu0 0.0
    %652 = vmatprep.subr.mxu0 0.0
    %653 = vmatpush1.msra.mxu0 0.0
    %654 = vmatprep.subr.mxu0 0.0
    %655 = vmatpush1.msra.mxu0 0.0
    %656 = vmatprep.subr.mxu0 0.0
    %657 = vmatpush1.msra.mxu0 0.0
    %658 = vmatprep.subr.mxu0 0.0
    %659 = vmatpush1.msra.mxu0 0.0
    %660 = vmatprep.subr.mxu0 0.0
    %661 = vmatpush1.msra.mxu0 0.0
    %662 = vmatprep.subr.mxu0 0.0
    %663 = vmatpush1.msra.mxu0 0.0
    %664 = vmatprep.subr.mxu0 0.0
    %v665 = vand.u32 %v312, 4294901760
    %666 = vmatpush1.msra.mxu0 %v665
    %667 = vmatprep.subr.mxu0 0.0
    %v668 = vand.u32 %v311, 4294901760
    %669 = vmatpush1.msra.mxu0 %v668
    %670 = vmatprep.subr.mxu0 0.0
    %v671 = vand.u32 %v310, 4294901760
    %672 = vmatpush1.msra.mxu0 %v671
    %673 = vmatprep.subr.mxu0 0.0
    %v674 = vand.u32 %v309, 4294901760
    %675 = vmatpush1.msra.mxu0 %v674
    %676 = vmatprep.subr.mxu0 0.0
    %v677 = vand.u32 %v308, 4294901760
    %678 = vmatpush1.msra.mxu0 %v677
    %679 = vmatprep.subr.mxu0 0.0
    %v680 = vand.u32 %v307, 4294901760
    %681 = vmatpush1.msra.mxu0 %v680
    %682 = vmatprep.subr.mxu0 0.0
    %683 = vmatpush2.msra.mxu0 0.0
    %684 = vmatprep.subr.mxu0 0.0
    %685 = vmatpush2.msra.mxu0 0.0
    %686 = vmatprep.subr.mxu0 0.0
    %687 = vmatpush2.msra.mxu0 0.0
    %688 = vmatprep.subr.mxu0 0.0
    %689 = vmatpush2.msra.mxu0 0.0
    %690 = vmatprep.subr.mxu0 0.0
    %691 = vmatpush2.msra.mxu0 0.0
    %692 = vmatprep.subr.mxu0 0.0
    %693 = vmatpush2.msra.mxu0 0.0
    %694 = vmatprep.subr.mxu0 0.0
    %695 = vmatpush2.msra.mxu0 0.0
    %696 = vmatprep.subr.mxu0 0.0
    %697 = vmatpush2.msra.mxu0 0.0
    %698 = vmatprep.subr.mxu0 0.0
    %699 = vmatpush2.msra.mxu0 0.0
    %700 = vmatprep.subr.mxu0 0.0
    %701 = vmatpush2.msra.mxu0 0.0
    %702 = vmatprep.subr.mxu0 0.0
    %703 = vmatpush2.msra.mxu0 0.0
    %704 = vmatprep.subr.mxu0 0.0
    %705 = vmatpush2.msra.mxu0 0.0
    %706 = vmatprep.subr.mxu0 0.0
    %707 = vmatpush2.msra.mxu0 0.0
    %708 = vmatprep.subr.mxu0 0.0
    %709 = vmatpush2.msra.mxu0 0.0
    %710 = vmatprep.subr.mxu0 0.0
    %711 = vmatpush2.msra.mxu0 0.0
    %712 = vmatprep.subr.mxu0 0.0
    %713 = vmatpush2.msra.mxu0 0.0
    %714 = vmatprep.mubr.f32.mxu0 0.0
    %v715 = vand.u32 %v351, 4294901760
    %v716 = vsub.f32 %v351, %v715
    %v717 = vand.u32 %v716, 4294901760
    %718 = vmatmul.mubr.f32.gmra.mxu0 %v717
    %v719 = vpop.f32.mrf.mxu0
    %v720 = vadd.f32 %v634, %v719
    %v721 = vpop.f32.mrf.mxu0
    %722 = vmatprep.mubr.f32.mxu0 0.0
    %v723 = vand.u32 %v353, 4294901760
    %v724 = vsub.f32 %v353, %v723
    %v725 = vand.u32 %v724, 4294901760
    %726 = vmatmul.mubr.f32.gmra.mxu0 %v725
    %v727 = vpop.f32.mrf.mxu0
    %v728 = vadd.f32 %v641, %v727
    %v729 = vpop.f32.mrf.mxu0
    %730 = vdwg.mxu0
    %731 = vmatprep.subr.mxu0 0.0
    %732 = vmatpush1.msra.mxu0 0.0
    %733 = vmatprep.subr.mxu0 0.0
    %734 = vmatpush1.msra.mxu0 0.0
    %735 = vmatprep.subr.mxu0 0.0
    %736 = vmatpush1.msra.mxu0 0.0
    %737 = vmatprep.subr.mxu0 0.0
    %738 = vmatpush1.msra.mxu0 0.0
    %739 = vmatprep.subr.mxu0 0.0
    %740 = vmatpush1.msra.mxu0 0.0
    %741 = vmatprep.subr.mxu0 0.0
    %742 = vmatpush1.msra.mxu0 0.0
    %743 = vmatprep.subr.mxu0 0.0
    %744 = vmatpush1.msra.mxu0 0.0
    %745 = vmatprep.subr.mxu0 0.0
    %746 = vmatpush1.msra.mxu0 0.0
    %747 = vmatprep.subr.mxu0 0.0
    %748 = vmatpush1.msra.mxu0 0.0
    %749 = vmatprep.subr.mxu0 0.0
    %750 = vmatpush1.msra.mxu0 0.0
    %751 = vmatprep.subr.mxu0 0.0
    %v752 = vand.u32 %v312, 4294901760
    %v753 = vsub.f32 %v312, %v752
    %v754 = vand.u32 %v753, 4294901760
    %755 = vmatpush1.msra.mxu0 %v754
    %756 = vmatprep.subr.mxu0 0.0
    %v757 = vand.u32 %v311, 4294901760
    %v758 = vsub.f32 %v311, %v757
    %v759 = vand.u32 %v758, 4294901760
    %760 = vmatpush1.msra.mxu0 %v759
    %761 = vmatprep.subr.mxu0 0.0
    %v762 = vand.u32 %v310, 4294901760
    %v763 = vsub.f32 %v310, %v762
    %v764 = vand.u32 %v763, 4294901760
    %765 = vmatpush1.msra.mxu0 %v764
    %766 = vmatprep.subr.mxu0 0.0
    %v767 = vand.u32 %v309, 4294901760
    %v768 = vsub.f32 %v309, %v767
    %v769 = vand.u32 %v768, 4294901760
    %770 = vmatpush1.msra.mxu0 %v769
    %771 = vmatprep.subr.mxu0 0.0
    %v772 = vand.u32 %v308, 4294901760
    %v773 = vsub.f32 %v308, %v772
    %v774 = vand.u32 %v773, 4294901760
    %775 = vmatpush1.msra.mxu0 %v774
    %776 = vmatprep.subr.mxu0 0.0
    %v777 = vand.u32 %v307, 4294901760
    %v778 = vsub.f32 %v307, %v777
    %v779 = vand.u32 %v778, 4294901760
    %780 = vmatpush1.msra.mxu0 %v779
    %781 = vmatprep.subr.mxu0 0.0
    %782 = vmatpush2.msra.mxu0 0.0
    %783 = vmatprep.subr.mxu0 0.0
    %784 = vmatpush2.msra.mxu0 0.0
    %785 = vmatprep.subr.mxu0 0.0
    %786 = vmatpush2.msra.mxu0 0.0
    %787 = vmatprep.subr.mxu0 0.0
    %788 = vmatpush2.msra.mxu0 0.0
    %789 = vmatprep.subr.mxu0 0.0
    %790 = vmatpush2.msra.mxu0 0.0
    %791 = vmatprep.subr.mxu0 0.0
    %792 = vmatpush2.msra.mxu0 0.0
    %793 = vmatprep.subr.mxu0 0.0
    %794 = vmatpush2.msra.mxu0 0.0
    %795 = vmatprep.subr.mxu0 0.0
    %796 = vmatpush2.msra.mxu0 0.0
    %797 = vmatprep.subr.mxu0 0.0
    %798 = vmatpush2.msra.mxu0 0.0
    %799 = vmatprep.subr.mxu0 0.0
    %800 = vmatpush2.msra.mxu0 0.0
    %801 = vmatprep.subr.mxu0 0.0
    %802 = vmatpush2.msra.mxu0 0.0
    %803 = vmatprep.subr.mxu0 0.0
    %804 = vmatpush2.msra.mxu0 0.0
    %805 = vmatprep.subr.mxu0 0.0
    %806 = vmatpush2.msra.mxu0 0.0
    %807 = vmatprep.subr.mxu0 0.0
    %808 = vmatpush2.msra.mxu0 0.0
    %809 = vmatprep.subr.mxu0 0.0
    %810 = vmatpush2.msra.mxu0 0.0
    %811 = vmatprep.subr.mxu0 0.0
    %812 = vmatpush2.msra.mxu0 0.0
    %813 = vmatprep.mubr.f32.mxu0 0.0
    %v814 = vand.u32 %v351, 4294901760
    %815 = vmatmul.mubr.f32.gmra.mxu0 %v814
    %v816 = vpop.f32.mrf.mxu0
    %v817 = vadd.f32 %v720, %v816
    %v818 = vpop.f32.mrf.mxu0
    %819 = vmatprep.mubr.f32.mxu0 0.0
    %v820 = vand.u32 %v353, 4294901760
    %821 = vmatmul.mubr.f32.gmra.mxu0 %v820
    %v822 = vpop.f32.mrf.mxu0
    %v823 = vadd.f32 %v728, %v822
    %v824 = vpop.f32.mrf.mxu0
    %825 = vdwg.mxu0
    %826 = vmatprep.subr.mxu0 0.0
    %827 = vmatpush1.msra.mxu0 0.0
    %828 = vmatprep.subr.mxu0 0.0
    %829 = vmatpush1.msra.mxu0 0.0
    %830 = vmatprep.subr.mxu0 0.0
    %831 = vmatpush1.msra.mxu0 0.0
    %832 = vmatprep.subr.mxu0 0.0
    %833 = vmatpush1.msra.mxu0 0.0
    %834 = vmatprep.subr.mxu0 0.0
    %835 = vmatpush1.msra.mxu0 0.0
    %836 = vmatprep.subr.mxu0 0.0
    %837 = vmatpush1.msra.mxu0 0.0
    %838 = vmatprep.subr.mxu0 0.0
    %839 = vmatpush1.msra.mxu0 0.0
    %840 = vmatprep.subr.mxu0 0.0
    %841 = vmatpush1.msra.mxu0 0.0
    %842 = vmatprep.subr.mxu0 0.0
    %843 = vmatpush1.msra.mxu0 0.0
    %844 = vmatprep.subr.mxu0 0.0
    %845 = vmatpush1.msra.mxu0 0.0
    %846 = vmatprep.subr.mxu0 0.0
    %v847 = vand.u32 %v312, 4294901760
    %848 = vmatpush1.msra.mxu0 %v847
    %849 = vmatprep.subr.mxu0 0.0
    %v850 = vand.u32 %v311, 4294901760
    %851 = vmatpush1.msra.mxu0 %v850
    %852 = vmatprep.subr.mxu0 0.0
    %v853 = vand.u32 %v310, 4294901760
    %854 = vmatpush1.msra.mxu0 %v853
    %855 = vmatprep.subr.mxu0 0.0
    %v856 = vand.u32 %v309, 4294901760
    %857 = vmatpush1.msra.mxu0 %v856
    %858 = vmatprep.subr.mxu0 0.0
    %v859 = vand.u32 %v308, 4294901760
    %860 = vmatpush1.msra.mxu0 %v859
    %861 = vmatprep.subr.mxu0 0.0
    %v862 = vand.u32 %v307, 4294901760
    %863 = vmatpush1.msra.mxu0 %v862
    %864 = vmatprep.subr.mxu0 0.0
    %865 = vmatpush2.msra.mxu0 0.0
    %866 = vmatprep.subr.mxu0 0.0
    %867 = vmatpush2.msra.mxu0 0.0
    %868 = vmatprep.subr.mxu0 0.0
    %869 = vmatpush2.msra.mxu0 0.0
    %870 = vmatprep.subr.mxu0 0.0
    %871 = vmatpush2.msra.mxu0 0.0
    %872 = vmatprep.subr.mxu0 0.0
    %873 = vmatpush2.msra.mxu0 0.0
    %874 = vmatprep.subr.mxu0 0.0
    %875 = vmatpush2.msra.mxu0 0.0
    %876 = vmatprep.subr.mxu0 0.0
    %877 = vmatpush2.msra.mxu0 0.0
    %878 = vmatprep.subr.mxu0 0.0
    %879 = vmatpush2.msra.mxu0 0.0
    %880 = vmatprep.subr.mxu0 0.0
    %881 = vmatpush2.msra.mxu0 0.0
    %882 = vmatprep.subr.mxu0 0.0
    %883 = vmatpush2.msra.mxu0 0.0
    %884 = vmatprep.subr.mxu0 0.0
    %885 = vmatpush2.msra.mxu0 0.0
    %886 = vmatprep.subr.mxu0 0.0
    %887 = vmatpush2.msra.mxu0 0.0
    %888 = vmatprep.subr.mxu0 0.0
    %889 = vmatpush2.msra.mxu0 0.0
    %890 = vmatprep.subr.mxu0 0.0
    %891 = vmatpush2.msra.mxu0 0.0
    %892 = vmatprep.subr.mxu0 0.0
    %893 = vmatpush2.msra.mxu0 0.0
    %894 = vmatprep.subr.mxu0 0.0
    %895 = vmatpush2.msra.mxu0 0.0
    %896 = vmatprep.mubr.f32.mxu0 0.0
    %v897 = vand.u32 %v351, 4294901760
    %898 = vmatmul.mubr.f32.gmra.mxu0 %v897
    %v899 = vpop.f32.mrf.mxu0
    %v900 = vadd.f32 %v817, %v899
    %v901 = vpop.f32.mrf.mxu0
    %902 = vmatprep.mubr.f32.mxu0 0.0
    %v903 = vand.u32 %v353, 4294901760
    %904 = vmatmul.mubr.f32.gmra.mxu0 %v903
    %v905 = vpop.f32.mrf.mxu0
    %v906 = vadd.f32 %v823, %v905
    %v907 = vpop.f32.mrf.mxu0
    %908 = vdwg.mxu0
    %909 = vst [vmem:[#allocation5] sm:$0xff] %v900
    %910 = vst [vmem:[#allocation5 + $0x8] sm:$0xff] %v906
    // Predicated region
    $region14: #{tpu_custom_call.1} parent=1 // pred_check
      _
    $region15: #{tpu_custom_call.1} parent=1 // pred_check_branch
      %912 = sbr.rel (0) target = $region17
    $region16: #{tpu_custom_call.1} parent=1 // pred_region
      %s914 = ssub.s32 256, 256
      %915 = vsyncadd [#allocation4], %s914
      %s916 = sshll.u32 [#allocation5], 4
      %s917 = int_to_ptr.vmem [resolvable:$true] %s916
      %922 = dma.vmem_to_hbm [thread:$0]  %s917, 256, %s2, [#allocation4], 128, 128, 8
    $region17: #{tpu_custom_call.1} parent=1 // pred_fallthru
      _
    // Predicated region
    $region18: #{tpu_custom_call.1} parent=1 // pred_check
      _
    $region19: #{tpu_custom_call.1} parent=1 // pred_check_branch
      %924 = sbr.rel (0) target = $region21
    $region20: #{tpu_custom_call.1} parent=1 // pred_region
      %925 = dma.done [#allocation4], 256
    $region21: #{tpu_custom_call.1} parent=1 // pred_fallthru
      _
    %926 = vsyncpa [#allocation3], 1
    %927 = vsyncpa [#allocation4], 1

</llo_original>
